<compile_context>
chip_gen: v6e
topology: v6e:2x2x1
jax: 0.10.0
libtpu: 0.0.40
codegen_flags: <defaults>
</compile_context>

<pallas_src>
import functools

import jax
import jax.numpy as jnp
from jax import lax
from jax.experimental import pallas as pl
from jax.experimental.pallas import tpu as pltpu


def _round_up(x, n):
    return ((x + n - 1) // n) * n


# ----------------------------------------------------------------------------
# NdProjectionHead forward: relu(x @ W1 + b1) @ W2 + b2, fused in one kernel.
# ----------------------------------------------------------------------------
def _proj_head_kernel(x_ref, w1_ref, b1_ref, w2_ref, b2_ref, o_ref):
    x = x_ref[...]                                        # (tm, in_dim) bf16
    # First NdLinear on the MXU, f32 accumulation, contraction on axis 1/0
    # (no explicit transposes).
    h = lax.dot_general(x, w1_ref[...],
                        dimension_numbers=(((1,), (0,)), ((), ())),
                        preferred_element_type=jnp.float32)
    h = jnp.maximum(h + b1_ref[...], 0.0)                 # bias + ReLU on VPU
    # Second NdLinear; ReLU output dropped to the weight dtype (bf16) so both
    # matmuls take the fast MXU operand path.
    y = lax.dot_general(h.astype(w2_ref.dtype), w2_ref[...],
                        dimension_numbers=(((1,), (0,)), ((), ())),
                        preferred_element_type=jnp.float32)
    o_ref[...] = (y + b2_ref[...]).astype(o_ref.dtype)


def nd_projection_head(x, w1, b1, w2, b2, *, tile_m=None,
                       compute_dtype=jnp.bfloat16):
    """Pallas forward of NdProjectionHead.  x: (M, in_dim)."""
    m, in_dim = x.shape
    hid = w1.shape[1]
    out_dim = w2.shape[1]

    # Lane-dense / MXU-aligned padding of the hidden and output feature dims.
    # Zero padding is exact: padded hidden columns are relu(x@0 + 0) = 0 and
    # contribute nothing through the zero-padded W2 rows; padded output
    # columns are sliced away below.
    hid_p = _round_up(hid, 128)
    out_p = _round_up(out_dim, 128)

    xc = x.astype(compute_dtype)
    w1p = jnp.pad(w1, ((0, 0), (0, hid_p - hid))).astype(compute_dtype)
    b1p = jnp.pad(b1, ((0, hid_p - hid),)).reshape(1, hid_p).astype(jnp.float32)
    w2p = jnp.pad(w2, ((0, hid_p - hid), (0, out_p - out_dim))).astype(compute_dtype)
    b2p = jnp.pad(b2, ((0, out_p - out_dim),)).reshape(1, out_p).astype(jnp.float32)

    # Row-tile size: dtype-aware sublane alignment, big tiles (per-grid-step
    # overhead ~0.35us; 512-wide tiles sit near the HBM roofline), but split
    # into >=2 parallel programs when the batch allows it so both v7x
    # TensorCores get work.
    row_align = 8 if jnp.dtype(compute_dtype).itemsize >= 4 else 16
    if tile_m is None:
        tile_m = min(512, _round_up(m, row_align))
        if m >= 2 * row_align and pl.cdiv(m, tile_m) < 2:
            tile_m = _round_up(pl.cdiv(m, 2), row_align)
    grid = (pl.cdiv(m, tile_m),)

    # VMEM working set: x and output tiles double-buffered, weights/biases
    # single-buffered, plus live f32 intermediates.  Raise the scoped VMEM
    # limit only when we actually need more than the default headroom.
    isz = jnp.dtype(compute_dtype).itemsize
    vmem_bytes = (
        2 * tile_m * in_dim * isz                      # x (double-buffered)
        + (in_dim * hid_p + hid_p * out_p) * isz       # W1, W2 (Buffered(1))
        + (hid_p + out_p) * 4                          # biases (f32)
        + 2 * tile_m * out_p * x.dtype.itemsize        # output (double-buffered)
        + tile_m * (hid_p + out_p) * 4                 # f32 intermediates
    )
    vmem_limit = None
    if vmem_bytes > 12 * 1024 * 1024:
        vmem_limit = min(int(vmem_bytes * 3 // 2), 64 * 1024 * 1024)

    out = pl.pallas_call(
        _proj_head_kernel,
        out_shape=jax.ShapeDtypeStruct((m, out_p), x.dtype),
        grid=grid,
        in_specs=[
            pl.BlockSpec((tile_m, in_dim), lambda i: (i, 0)),        # x row tile
            # Grid-invariant weights/biases: single buffer (index_map is
            # constant in i, so a second pipeline buffer is pure VMEM waste).
            pl.BlockSpec((in_dim, hid_p), lambda i: (0, 0),
                         pipeline_mode=pl.Buffered(1)),
            pl.BlockSpec((1, hid_p), lambda i: (0, 0),
                         pipeline_mode=pl.Buffered(1)),
            pl.BlockSpec((hid_p, out_p), lambda i: (0, 0),
                         pipeline_mode=pl.Buffered(1)),
            pl.BlockSpec((1, out_p), lambda i: (0, 0),
                         pipeline_mode=pl.Buffered(1)),
        ],
        out_specs=pl.BlockSpec((tile_m, out_p), lambda i: (i, 0)),
        compiler_params=pltpu.CompilerParams(
            dimension_semantics=("parallel",),
            vmem_limit_bytes=vmem_limit),
    )(xc, w1p, b1p, w2p, b2p)
    # TODO(synk): when truly K-bound (in_dim*hid_p weights > ~16 MiB, v7x),
    # add a trailing "arbitrary" reduction axis over in_dim with a VMEM f32
    # accumulator instead of keeping full W1 resident.
    return out[:, :out_dim]


def _proj_head_ref(x, w1, b1, w2, b2, compute_dtype=jnp.bfloat16):
    """Reference with the same operand casts as the kernel (f32 accumulation)."""
    h = jnp.dot(x.astype(compute_dtype), w1.astype(compute_dtype),
                preferred_element_type=jnp.float32) + b1
    h = jnp.maximum(h, 0.0)
    y = jnp.dot(h.astype(compute_dtype), w2.astype(compute_dtype),
                preferred_element_type=jnp.float32) + b2
    return y.astype(x.dtype)


# ----------------------------------------------------------------------------
# NT-Xent loss (companion contrastive loss), review feedback applied.
# ----------------------------------------------------------------------------
def _ntxent_kernel(zi_ref, zj_ref, loss_ref, *, temperature: float):
    zi = zi_ref[...].astype(jnp.float32)                  # (B, D)
    zj = zj_ref[...].astype(jnp.float32)                  # (B, D)
    b = zi.shape[0]
    inv_t = jnp.float32(1.0 / temperature)

    # F.normalize(x, dim=1): one EUP rsqrt per row (eps squared under the max).
    def _rownorm(x):
        ss = jnp.sum(x * x, axis=1, keepdims=True)
        return x * lax.rsqrt(jnp.maximum(ss, jnp.float32(1e-24)))

    zi_n = _rownorm(zi)
    zj_n = _rownorm(zj)

    # Positive pairs: row-wise dot of the two normalized halves (f32, exact).
    pos = jnp.sum(zi_n * zj_n, axis=1) * inv_t            # (B,)

    # Gram blocks on the bf16 MXU path, f32 accumulation, feature-axis
    # contraction (no materialized transposes).
    zi_b = zi_n.astype(jnp.bfloat16)
    zj_b = zj_n.astype(jnp.bfloat16)
    dn = (((1,), (1,)), ((), ()))
    s_ii = lax.dot_general(zi_b, zi_b, dn, preferred_element_type=jnp.float32) * inv_t
    s_ij = lax.dot_general(zi_b, zj_b, dn, preferred_element_type=jnp.float32) * inv_t
    s_jj = lax.dot_general(zj_b, zj_b, dn, preferred_element_type=jnp.float32) * inv_t

    # Max-shift by 1/T (cosine similarity <= 1, so every s <= 1/T): exp never
    # overflows even at tiny temperatures, and the analytic diagonal self-term
    # becomes exactly 1 after the shift.
    e_ii = jnp.exp(s_ii - inv_t)
    e_ij = jnp.exp(s_ij - inv_t)
    e_jj = jnp.exp(s_jj - inv_t)

    denom_i = jnp.sum(e_ii, axis=1) + jnp.sum(e_ij, axis=1) - 1.0   # (B,)
    denom_j = jnp.sum(e_jj, axis=1) + jnp.sum(e_ij, axis=0) - 1.0   # (B,)

    # loss_r = (log(denom_r) + 1/T) - pos_r ; mean over all 2B rows.
    total = (jnp.sum(jnp.log(denom_i)) + jnp.sum(jnp.log(denom_j))
             + jnp.float32(2 * b) * inv_t - 2.0 * jnp.sum(pos))
    loss_ref[...] = (total * jnp.float32(1.0 / (2 * b))).reshape(1, 1)


def ntxent_loss(z_i: jax.Array, z_j: jax.Array, temperature: float = 0.5) -> jax.Array:
    assert z_i.shape == z_j.shape and z_i.ndim == 2
    kernel = functools.partial(_ntxent_kernel, temperature=float(temperature))
    # TODO(synk): for large B (where ~6 live BxB f32 buffers would exceed the
    # scoped VMEM limit, ~B>=1k on v7x) tile query rows x key columns
    # flash-style with online denominator accumulation in scratch and a
    # pl.when finalize of the mean; a single invocation is optimal at demo B.
    out = pl.pallas_call(
        kernel,
        out_shape=jax.ShapeDtypeStruct((1, 1), jnp.float32),
        in_specs=[pl.BlockSpec(memory_space=pltpu.VMEM),
                  pl.BlockSpec(memory_space=pltpu.VMEM)],
        out_specs=pl.BlockSpec(memory_space=pltpu.VMEM),
    )(z_i, z_j)
    return out[0, 0]


def _ntxent_ref(z_i, z_j, temperature=0.5):
    """Pure-JAX reference mirroring the PyTorch NT-Xent forward exactly."""
    def norm(x):
        return x / jnp.maximum(jnp.linalg.norm(x, axis=1, keepdims=True), 1e-12)
    z_i, z_j = norm(z_i), norm(z_j)
    b = z_i.shape[0]
    reps = jnp.concatenate([z_i, z_j], axis=0)
    sim = jnp.dot(reps, reps.T, precision=lax.Precision.HIGHEST) / temperature
    n = 2 * b
    sim = jnp.where(jnp.eye(n, dtype=bool), -9000000000000000.0, sim)
    pos_idx = jnp.concatenate([jnp.arange(b, 2 * b), jnp.arange(0, b)])
    positives = sim[jnp.arange(n), pos_idx]
    loss = -jnp.log(jnp.exp(positives) / jnp.sum(jnp.exp(sim), axis=1))
    return loss.mean()


# ----------------------------------------------------------------------------
if __name__ == "__main__":
    key = jax.random.PRNGKey(0)
    kx1, kx2, kw1, kb1, kw2, kb2 = jax.random.split(key, 6)

    B, IN_DIM, HID_DIM, OUT_DIM = 8, 32, 64, 16

    # Two augmented views (SimCLR-style inputs to the projection head).
    x_i = jax.random.normal(kx1, (B, IN_DIM), dtype=jnp.float32)
    x_j = jax.random.normal(kx2, (B, IN_DIM), dtype=jnp.float32)

    # NdLinear parameters (nn.Linear-style fan-in scaling).
    w1 = jax.random.uniform(kw1, (IN_DIM, HID_DIM), jnp.float32, -1.0, 1.0) / jnp.sqrt(IN_DIM)
    b1 = jax.random.uniform(kb1, (HID_DIM,), jnp.float32, -1.0, 1.0) / jnp.sqrt(IN_DIM)
    w2 = jax.random.uniform(kw2, (HID_DIM, OUT_DIM), jnp.float32, -1.0, 1.0) / jnp.sqrt(HID_DIM)
    b2 = jax.random.uniform(kb2, (OUT_DIM,), jnp.float32, -1.0, 1.0) / jnp.sqrt(HID_DIM)

    # One pallas_call for BOTH augmented views (stacked on the batch axis):
    # at these tiny shapes, launch/DMA overhead dominates, so halving the
    # number of calls is the lever that moves wall-clock.
    x_both = jnp.concatenate([x_i, x_j], axis=0)          # (2B, IN_DIM)
    z_both = jax.block_until_ready(nd_projection_head(x_both, w1, b1, w2, b2))
    z_i, z_j = z_both[:B], z_both[B:]

    z_ref = _proj_head_ref(x_both, w1, b1, w2, b2)
    assert jnp.allclose(z_both, z_ref, rtol=1e-3, atol=1e-3), "projection head mismatch"

    # Companion NT-Xent loss kernel (bf16 Gram matmuls -> slightly looser tol
    # against the f32 HIGHEST reference).
    loss = jax.block_until_ready(ntxent_loss(z_i, z_j, temperature=0.5))
    loss_ref = _ntxent_ref(z_i, z_j, temperature=0.5)
    assert jnp.allclose(loss, loss_ref, rtol=3e-2, atol=3e-2), (loss, loss_ref)

    print("KERNEL_OK")
</pallas_src>

<mosaic_0001>
module attributes {stable_mosaic.version = 11 : i64} {
  func.func @_proj_head_kernel(%arg0: i32, %arg1: memref<16x32xbf16, #tpu.memory_space<vmem>>, %arg2: memref<32x128xbf16, #tpu.memory_space<vmem>>, %arg3: memref<1x128xf32, #tpu.memory_space<vmem>>, %arg4: memref<128x128xbf16, #tpu.memory_space<vmem>>, %arg5: memref<1x128xf32, #tpu.memory_space<vmem>>, %arg6: memref<16x128xf32, #tpu.memory_space<vmem>>) attributes {dimension_semantics = [#tpu.dimension_semantics<parallel>], iteration_bounds = array<i64: 1>, scalar_prefetch = 0 : i64, scratch_operands = 0 : i64, tpu.core_type = #tpu.core_type<tc>, window_params = [{transform_indices = @transform_0, window_bounds = array<i64: 16, 32>}, {pipeline_mode = #tpu.pipeline_mode<synchronous>, transform_indices = @transform_1, window_bounds = array<i64: 32, 128>}, {pipeline_mode = #tpu.pipeline_mode<synchronous>, transform_indices = @transform_2, window_bounds = array<i64: 1, 128>}, {pipeline_mode = #tpu.pipeline_mode<synchronous>, transform_indices = @transform_3, window_bounds = array<i64: 128, 128>}, {pipeline_mode = #tpu.pipeline_mode<synchronous>, transform_indices = @transform_4, window_bounds = array<i64: 1, 128>}, {transform_indices = @transform_5, window_bounds = array<i64: 16, 128>}]} {
    %c0 = arith.constant 0 : index
    %c0_0 = arith.constant 0 : index
    %0 = vector.load %arg1[%c0, %c0_0] : memref<16x32xbf16, #tpu.memory_space<vmem>>, vector<16x32xbf16>
    %c0_1 = arith.constant 0 : index
    %c0_2 = arith.constant 0 : index
    %1 = vector.load %arg2[%c0_1, %c0_2] : memref<32x128xbf16, #tpu.memory_space<vmem>>, vector<32x128xbf16>
    %cst = arith.constant dense<0.000000e+00> : vector<16x128xf32>
    %2 = tpu.matmul %0, %1, %cst {dimension_numbers = #tpu.dot_dimension_numbers<[1], [0], [0], [1], [0, 0, 1, 1], [], []>} : vector<16x32xbf16>, vector<32x128xbf16>, vector<16x128xf32> -> vector<16x128xf32>
    %c0_3 = arith.constant 0 : index
    %c0_4 = arith.constant 0 : index
    %3 = vector.load %arg3[%c0_3, %c0_4] : memref<1x128xf32, #tpu.memory_space<vmem>>, vector<1x128xf32>
    %4 = vector.broadcast %3 : vector<1x128xf32> to vector<16x128xf32>
    %5 = arith.addf %2, %4 : vector<16x128xf32>
    %cst_5 = arith.constant 0.000000e+00 : f32
    %6 = vector.broadcast %cst_5 : f32 to vector<16x128xf32>
    %7 = arith.maximumf %5, %6 : vector<16x128xf32>
    %8 = arith.truncf %7 : vector<16x128xf32> to vector<16x128xbf16>
    %c0_6 = arith.constant 0 : index
    %c0_7 = arith.constant 0 : index
    %9 = vector.load %arg4[%c0_6, %c0_7] : memref<128x128xbf16, #tpu.memory_space<vmem>>, vector<128x128xbf16>
    %cst_8 = arith.constant dense<0.000000e+00> : vector<16x128xf32>
    %10 = tpu.matmul %8, %9, %cst_8 {dimension_numbers = #tpu.dot_dimension_numbers<[1], [0], [0], [1], [0, 0, 1, 1], [], []>} : vector<16x128xbf16>, vector<128x128xbf16>, vector<16x128xf32> -> vector<16x128xf32>
    %c0_9 = arith.constant 0 : index
    %c0_10 = arith.constant 0 : index
    %11 = vector.load %arg5[%c0_9, %c0_10] : memref<1x128xf32, #tpu.memory_space<vmem>>, vector<1x128xf32>
    %12 = vector.broadcast %11 : vector<1x128xf32> to vector<16x128xf32>
    %13 = arith.addf %10, %12 : vector<16x128xf32>
    %c0_11 = arith.constant 0 : index
    %c0_12 = arith.constant 0 : index
    %14 = vector.load %arg6[%c0_11, %c0_12] : memref<16x128xf32, #tpu.memory_space<vmem>>, vector<16x128xf32>
    tpu.vector_store %arg6[%c0_11, %c0_12], %13 {strides = array<i32>} : memref<16x128xf32, #tpu.memory_space<vmem>>, vector<16x128xf32>,
    return
  }
  func.func @transform_0(%arg0: i32) -> (i32, i32) {
    %c0_i32 = arith.constant 0 : i32
    %c0_i32_0 = arith.constant 0 : i32
    return %arg0, %c0_i32 : i32, i32
  }
  func.func @transform_1(%arg0: i32) -> (i32, i32) {
    %c0_i32 = arith.constant 0 : i32
    %c0_i32_0 = arith.constant 0 : i32
    %c0_i32_1 = arith.constant 0 : i32
    return %c0_i32, %c0_i32_0 : i32, i32
  }
  func.func @transform_2(%arg0: i32) -> (i32, i32) {
    %c0_i32 = arith.constant 0 : i32
    %c0_i32_0 = arith.constant 0 : i32
    %c0_i32_1 = arith.constant 0 : i32
    return %c0_i32, %c0_i32_0 : i32, i32
  }
  func.func @transform_3(%arg0: i32) -> (i32, i32) {
    %c0_i32 = arith.constant 0 : i32
    %c0_i32_0 = arith.constant 0 : i32
    %c0_i32_1 = arith.constant 0 : i32
    return %c0_i32, %c0_i32_0 : i32, i32
  }
  func.func @transform_4(%arg0: i32) -> (i32, i32) {
    %c0_i32 = arith.constant 0 : i32
    %c0_i32_0 = arith.constant 0 : i32
    %c0_i32_1 = arith.constant 0 : i32
    return %c0_i32, %c0_i32_0 : i32, i32
  }
  func.func @transform_5(%arg0: i32) -> (i32, i32) {
    %c0_i32 = arith.constant 0 : i32
    %c0_i32_0 = arith.constant 0 : i32
    return %arg0, %c0_i32 : i32, i32
  }
}

</mosaic_0001>

<llo_original>
// kernel: tpu_custom_call.1
$region0: #{tpu_custom_call.1}
  #allocation0 [shape = 'u32[]', space=smem, size = 0x4, offset = 0x4, fixed_abs, tag = 'smem constant byte address 0x4 - core index']
  #allocation1 [shape = 'u32[144,128]{1,0:T(1,128)}', space=vmem, size = 0x12000, scoped, tag = 'internal scratch']
  %s0 = inlined_call_operand.hbm [shape: bf16[16,32], index: 0, kind: input, shape index: {}]
  %s1 = inlined_call_operand.hbm [shape: bf16[32,128], index: 1, kind: input, shape index: {}]
  %s2 = inlined_call_operand.vmem [shape: f32[1,128], index: 2, kind: input, shape index: {}]
  %s3 = inlined_call_operand.hbm [shape: bf16[128,128], index: 3, kind: input, shape index: {}]
  %s4 = inlined_call_operand.vmem [shape: f32[1,128], index: 4, kind: input, shape index: {}]
  %s5 = inlined_call_operand.hbm [shape: f32[16,128], index: 5, kind: output, shape index: {}]
  %s6 = sld [smem:[#allocation0]]
  $region42: #{tpu_custom_call.1} parent=0
    _
  %s8 = ssub.s32 1, %s6
  %s9 = scalar_select 0, %s8, %s6
  $region1: #{tpu_custom_call.1} parent=0
    #allocation2 [shape = 'u8[4096]{0}', space=vmem, size = 0x1000, scoped, tag = 'input window, operand 0, single buffered']
    #allocation3 [shape = 's32[1]{0}', space=sflag, size = 0x4, scoped, tag = 'scoped memory for tpu_custom_call.1']
    #allocation4 [shape = 's32[1]{0}', space=sflag, size = 0x4, scoped, tag = 'scoped memory for tpu_custom_call.1']
    #allocation5 [shape = 'u8[8192]{0}', space=vmem, size = 0x2000, scoped, tag = 'input window, operand 1, single buffered']
    #allocation6 [shape = 's32[1]{0}', space=sflag, size = 0x4, scoped, tag = 'scoped memory for tpu_custom_call.1']
    #allocation7 [shape = 'u8[32768]{0}', space=vmem, size = 0x8000, scoped, tag = 'input window, operand 3, single buffered']
    #allocation8 [shape = 'u8[8192]{0}', space=vmem, size = 0x2000, scoped, tag = 'output window, operand 0, single buffered']
    %10 = vsyncpa [#allocation3], 0
    %11 = vsyncpa [#allocation6], 0
    %12 = vsyncpa [#allocation4], 0
    // Predicated region
    $region2: #{tpu_custom_call.1} parent=1 // pred_check
      _
    $region3: #{tpu_custom_call.1} parent=1 // pred_check_branch
      %14 = sbr.rel (0) target = $region5
    $region4: #{tpu_custom_call.1} parent=1 // pred_region
      %s16 = ssub.s32 128, 128
      %17 = vsyncadd [#allocation3], %s16
      %s18 = sshll.u32 [#allocation2], 4
      %s19 = int_to_ptr.vmem [resolvable:$true] %s18
      %24 = dma.hbm_to_vmem [thread:$0]  %s0, 128, %s19, [#allocation3], 64, 64, 4
    $region5: #{tpu_custom_call.1} parent=1 // pred_fallthru
      _
    // Predicated region
    $region6: #{tpu_custom_call.1} parent=1 // pred_check
      _
    $region7: #{tpu_custom_call.1} parent=1 // pred_check_branch
      %26 = sbr.rel (0) target = $region9
    $region8: #{tpu_custom_call.1} parent=1 // pred_region
      %s28 = ssub.s32 256, 256
      %29 = vsyncadd [#allocation6], %s28
      %s30 = sshll.u32 [#allocation5], 4
      %s31 = int_to_ptr.vmem [resolvable:$true] %s30
      %36 = dma.hbm_to_vmem [thread:$0]  %s1, 256, %s31, [#allocation6], 64, 64, 4
    $region9: #{tpu_custom_call.1} parent=1 // pred_fallthru
      _
    // Predicated region
    $region10: #{tpu_custom_call.1} parent=1 // pred_check
      _
    $region11: #{tpu_custom_call.1} parent=1 // pred_check_branch
      %38 = sbr.rel (0) target = $region13
    $region12: #{tpu_custom_call.1} parent=1 // pred_region
      _
    $region13: #{tpu_custom_call.1} parent=1 // pred_fallthru
      _
    // Predicated region
    $region14: #{tpu_custom_call.1} parent=1 // pred_check
      _
    $region15: #{tpu_custom_call.1} parent=1 // pred_check_branch
      %40 = sbr.rel (0) target = $region17
    $region16: #{tpu_custom_call.1} parent=1 // pred_region
      %s42 = ssub.s32 1024, 1024
      %43 = vsyncadd [#allocation6], %s42
      %s44 = sshll.u32 [#allocation7], 4
      %s45 = int_to_ptr.vmem [resolvable:$true] %s44
      %50 = dma.hbm_to_vmem [thread:$0]  %s3, 1024, %s45, [#allocation6], 64, 64, 4
    $region17: #{tpu_custom_call.1} parent=1 // pred_fallthru
      _
    // Predicated region
    $region18: #{tpu_custom_call.1} parent=1 // pred_check
      _
    $region19: #{tpu_custom_call.1} parent=1 // pred_check_branch
      %52 = sbr.rel (0) target = $region21
    $region20: #{tpu_custom_call.1} parent=1 // pred_region
      _
    $region21: #{tpu_custom_call.1} parent=1 // pred_fallthru
      _
    // Predicated region
    $region22: #{tpu_custom_call.1} parent=1 // pred_check
      _
    $region23: #{tpu_custom_call.1} parent=1 // pred_check_branch
      %54 = sbr.rel (0) target = $region25
    $region24: #{tpu_custom_call.1} parent=1 // pred_region
      %55 = dma.done [#allocation3], 128
    $region25: #{tpu_custom_call.1} parent=1 // pred_fallthru
      _
    // Predicated region
    $region26: #{tpu_custom_call.1} parent=1 // pred_check
      _
    $region27: #{tpu_custom_call.1} parent=1 // pred_check_branch
      %57 = sbr.rel (0) target = $region29
    $region28: #{tpu_custom_call.1} parent=1 // pred_region
      %58 = dma.done [#allocation6], 256
    $region29: #{tpu_custom_call.1} parent=1 // pred_fallthru
      _
    // Predicated region
    $region30: #{tpu_custom_call.1} parent=1 // pred_check
      _
    $region31: #{tpu_custom_call.1} parent=1 // pred_check_branch
      %60 = sbr.rel (0) target = $region33
    $region32: #{tpu_custom_call.1} parent=1 // pred_region
      %61 = dma.done [#allocation6], 1024
    $region33: #{tpu_custom_call.1} parent=1 // pred_fallthru
      _
    %v63 = vld [vmem:[#allocation2] sm:$0xf]
    %v64 = vld [vmem:[#allocation2 + $0x4] sm:$0xf]
    %v65 = vld [vmem:[#allocation5] sm:$0xf]
    %v66 = vld [vmem:[#allocation5 + $0x4] sm:$0xf]
    %v67 = vld [vmem:[#allocation5 + $0x8] sm:$0xf]
    %v68 = vld [vmem:[#allocation5 + $0xc] sm:$0xf]
    %v69 = vld [vmem:[%s2] sm:$0x1]
    %v71 = vlaneseq
    %v72 = vshrl.u32 %v71, 7
    %v73 = vsub.s32 0, %v72
    %v74 = vrot.slane %v69, %v73
    %v78 = vunpack.c.l.b16 %v63
    %v79 = vunpack.c.l.b16 %v64
    %v80 = vpack.c.b16 %v79, %v78
    %v85 = vunpack.c.l.b16 %v65
    %v86 = vunpack.c.l.b16 %v66
    %v87 = vunpack.c.l.b16 %v67
    %v88 = vunpack.c.l.b16 %v68
    %v89 = vpack.c.b16 %v86, %v85
    %v90 = vpack.c.b16 %v88, %v87
    %vm93 = vcmask 261120
    %v95 = vsel %vm93, %v80, 0
    %97 = vmatprep.subr.bf16.mxu0 0
    %98 = vmatpush1.bf16.msra.mxu0 0
    %99 = vmatprep.subr.bf16.mxu0 0
    %100 = vmatpush1.bf16.msra.mxu0 0
    %101 = vmatprep.subr.bf16.mxu0 0
    %102 = vmatpush1.bf16.msra.mxu0 0
    %103 = vmatprep.subr.bf16.mxu0 0
    %104 = vmatpush1.bf16.msra.mxu0 0
    %105 = vmatprep.subr.bf16.mxu0 0
    %106 = vmatpush1.bf16.msra.mxu0 0
    %107 = vmatprep.subr.bf16.mxu0 0
    %108 = vmatpush1.bf16.msra.mxu0 0
    %109 = vmatprep.subr.bf16.mxu0 0
    %110 = vmatpush1.bf16.msra.mxu0 %v90
    %111 = vmatprep.subr.bf16.mxu0 0
    %112 = vmatpush1.bf16.msra.mxu0 %v89
    %113 = vmatprep.subr.bf16.mxu0 0
    %114 = vmatpush2.bf16.msra.mxu0 0
    %115 = vmatprep.subr.bf16.mxu0 0
    %116 = vmatpush2.bf16.msra.mxu0 0
    %117 = vmatprep.subr.bf16.mxu0 0
    %118 = vmatpush2.bf16.msra.mxu0 0
    %119 = vmatprep.subr.bf16.mxu0 0
    %120 = vmatpush2.bf16.msra.mxu0 0
    %121 = vmatprep.subr.bf16.mxu0 0
    %122 = vmatpush2.bf16.msra.mxu0 0
    %123 = vmatprep.subr.bf16.mxu0 0
    %124 = vmatpush2.bf16.msra.mxu0 0
    %125 = vmatprep.subr.bf16.mxu0 0
    %126 = vmatpush2.bf16.msra.mxu0 0
    %127 = vmatprep.subr.bf16.mxu0 0
    %128 = vmatpush2.bf16.msra.mxu0 0
    %129 = vmatprep.mubr.bf16.mxu0 0
    %130 = vmatmul.mubr.bf16.gmra.mxu0 %v95
    %v131 = vpop.f32.mrf.mxu0
    %v132 = vadd.f32 %v74, %v131
    %v133 = vpop.f32.mrf.mxu0
    %v134 = vpop.f32.mrf.mxu0
    %v135 = vadd.f32 %v74, %v134
    %v136 = vpop.f32.mrf.mxu0
    %137 = vdwg.mxu0
    %v138 = vmax.f32 %v132, 0.0
    %v139 = vmax.f32 %v135, 0.0
    %v140 = vpack.c.bf16 %v139, %v138
    %v141 = vld [vmem:[#allocation7] sm:$0xf]
    %v142 = vld [vmem:[#allocation7 + $0x4] sm:$0xf]
    %v143 = vld [vmem:[#allocation7 + $0x8] sm:$0xf]
    %v144 = vld [vmem:[#allocation7 + $0xc] sm:$0xf]
    %v145 = vld [vmem:[#allocation7 + $0x10] sm:$0xf]
    %v146 = vld [vmem:[#allocation7 + $0x14] sm:$0xf]
    %v147 = vld [vmem:[#allocation7 + $0x18] sm:$0xf]
    %v148 = vld [vmem:[#allocation7 + $0x1c] sm:$0xf]
    %v149 = vld [vmem:[#allocation7 + $0x20] sm:$0xf]
    %v150 = vld [vmem:[#allocation7 + $0x24] sm:$0xf]
    %v151 = vld [vmem:[#allocation7 + $0x28] sm:$0xf]
    %v152 = vld [vmem:[#allocation7 + $0x2c] sm:$0xf]
    %v153 = vld [vmem:[#allocation7 + $0x30] sm:$0xf]
    %v154 = vld [vmem:[#allocation7 + $0x34] sm:$0xf]
    %v155 = vld [vmem:[#allocation7 + $0x38] sm:$0xf]
    %v156 = vld [vmem:[#allocation7 + $0x3c] sm:$0xf]
    %v157 = vld [vmem:[%s4] sm:$0x1]
    %v159 = vlaneseq
    %v160 = vshrl.u32 %v159, 7
    %v161 = vsub.s32 0, %v160
    %v162 = vrot.slane %v157, %v161
    %v180 = vunpack.c.l.b16 %v141
    %v181 = vunpack.c.l.b16 %v142
    %v182 = vunpack.c.l.b16 %v143
    %v183 = vunpack.c.l.b16 %v144
    %v184 = vunpack.c.l.b16 %v145
    %v185 = vunpack.c.l.b16 %v146
    %v186 = vunpack.c.l.b16 %v147
    %v187 = vunpack.c.l.b16 %v148
    %v188 = vunpack.c.l.b16 %v149
    %v189 = vunpack.c.l.b16 %v150
    %v190 = vunpack.c.l.b16 %v151
    %v191 = vunpack.c.l.b16 %v152
    %v192 = vunpack.c.l.b16 %v153
    %v193 = vunpack.c.l.b16 %v154
    %v194 = vunpack.c.l.b16 %v155
    %v195 = vunpack.c.l.b16 %v156
    %v196 = vpack.c.b16 %v181, %v180
    %v197 = vpack.c.b16 %v183, %v182
    %v198 = vpack.c.b16 %v185, %v184
    %v199 = vpack.c.b16 %v187, %v186
    %v200 = vpack.c.b16 %v189, %v188
    %v201 = vpack.c.b16 %v191, %v190
    %v202 = vpack.c.b16 %v193, %v192
    %v203 = vpack.c.b16 %v195, %v194
    %212 = vmatprep.subr.bf16.mxu0 0
    %213 = vmatpush1.bf16.msra.mxu0 %v203
    %214 = vmatprep.subr.bf16.mxu0 0
    %215 = vmatpush1.bf16.msra.mxu0 %v202
    %216 = vmatprep.subr.bf16.mxu0 0
    %217 = vmatpush1.bf16.msra.mxu0 %v201
    %218 = vmatprep.subr.bf16.mxu0 0
    %219 = vmatpush1.bf16.msra.mxu0 %v200
    %220 = vmatprep.subr.bf16.mxu0 0
    %221 = vmatpush1.bf16.msra.mxu0 %v199
    %222 = vmatprep.subr.bf16.mxu0 0
    %223 = vmatpush1.bf16.msra.mxu0 %v198
    %224 = vmatprep.subr.bf16.mxu0 0
    %225 = vmatpush1.bf16.msra.mxu0 %v197
    %226 = vmatprep.subr.bf16.mxu0 0
    %227 = vmatpush1.bf16.msra.mxu0 %v196
    %228 = vmatprep.subr.bf16.mxu0 0
    %229 = vmatpush2.bf16.msra.mxu0 0
    %230 = vmatprep.subr.bf16.mxu0 0
    %231 = vmatpush2.bf16.msra.mxu0 0
    %232 = vmatprep.subr.bf16.mxu0 0
    %233 = vmatpush2.bf16.msra.mxu0 0
    %234 = vmatprep.subr.bf16.mxu0 0
    %235 = vmatpush2.bf16.msra.mxu0 0
    %236 = vmatprep.subr.bf16.mxu0 0
    %237 = vmatpush2.bf16.msra.mxu0 0
    %238 = vmatprep.subr.bf16.mxu0 0
    %239 = vmatpush2.bf16.msra.mxu0 0
    %240 = vmatprep.subr.bf16.mxu0 0
    %241 = vmatpush2.bf16.msra.mxu0 0
    %242 = vmatprep.subr.bf16.mxu0 0
    %243 = vmatpush2.bf16.msra.mxu0 0
    %244 = vmatprep.mubr.bf16.mxu0 0
    %245 = vmatmul.mubr.bf16.gmra.mxu0 %v140
    %v246 = vpop.f32.mrf.mxu0
    %v247 = vadd.f32 %v162, %v246
    %v248 = vpop.f32.mrf.mxu0
    %v249 = vpop.f32.mrf.mxu0
    %v250 = vadd.f32 %v162, %v249
    %v251 = vpop.f32.mrf.mxu0
    %252 = vdwg.mxu0
    %253 = vst [vmem:[#allocation8] sm:$0xff] %v247
    %254 = vst [vmem:[#allocation8 + $0x8] sm:$0xff] %v250
    // Predicated region
    $region34: #{tpu_custom_call.1} parent=1 // pred_check
      _
    $region35: #{tpu_custom_call.1} parent=1 // pred_check_branch
      %256 = sbr.rel (0) target = $region37
    $region36: #{tpu_custom_call.1} parent=1 // pred_region
      %s258 = ssub.s32 256, 256
      %259 = vsyncadd [#allocation4], %s258
      %s260 = sshll.u32 [#allocation8], 4
      %s261 = int_to_ptr.vmem [resolvable:$true] %s260
      %266 = dma.vmem_to_hbm [thread:$0]  %s261, 256, %s5, [#allocation4], 128, 128, 8
    $region37: #{tpu_custom_call.1} parent=1 // pred_fallthru
      _
    // Predicated region
    $region38: #{tpu_custom_call.1} parent=1 // pred_check
      _
    $region39: #{tpu_custom_call.1} parent=1 // pred_check_branch
      %268 = sbr.rel (0) target = $region41
    $region40: #{tpu_custom_call.1} parent=1 // pred_region
      %269 = dma.done [#allocation4], 256
    $region41: #{tpu_custom_call.1} parent=1 // pred_fallthru
      _
    %270 = vsyncpa [#allocation3], 1
    %271 = vsyncpa [#allocation6], 1
    %272 = vsyncpa [#allocation4], 1

</llo_original>
